<compile_context>
chip_gen: v6e
topology: v6e:2x2x1
jax: 0.10.0
libtpu: 0.0.40
codegen_flags: <defaults>
</compile_context>

<pallas_src>
import functools
import math

import numpy as np
import jax
import jax.numpy as jnp
from jax import lax
from jax.experimental import pallas as pl
from jax.experimental.pallas import tpu as pltpu


# --------------------------------------------------------------------------
# Stage 1: fused-head Q / K^T / V^T projections (lane-dense MXU matmuls).
# --------------------------------------------------------------------------
def _qkv_proj_kernel(x_ref, wq_ref, wk_ref, wv_ref, q_ref, kt_ref, vt_ref,
                     *, compute_dtype):
    # x_ref : (1, block_s, hidden)      input rows for this tile
    # w*_ref: (hidden, hidden)          PyTorch-layout weights (out, in);
    #                                   Wq already scaled by 1/sqrt(Dh)
    # q_ref : (1, block_s, hidden)      Q (scaled), normal layout
    # kt_ref/vt_ref: (1, hidden, block_s)  K^T / V^T — S stays on the lane axis
    x = x_ref[0].astype(compute_dtype)                       # (block_s, hidden)
    nt = (((1,), (1,)), ((), ()))                            # contract lane dims (NT)

    # Q = x @ Wq^T
    q_ref[0] = lax.dot_general(
        x, wq_ref[...], nt,
        preferred_element_type=jnp.float32).astype(q_ref.dtype)
    # K^T = Wk @ x^T  -> (hidden, block_s)
    kt_ref[0] = lax.dot_general(
        wk_ref[...], x, nt,
        preferred_element_type=jnp.float32).astype(kt_ref.dtype)
    # V^T = Wv @ x^T  -> (hidden, block_s)
    vt_ref[0] = lax.dot_general(
        wv_ref[...], x, nt,
        preferred_element_type=jnp.float32).astype(vt_ref.dtype)


# --------------------------------------------------------------------------
# Stage 2: per-head hard-masked softmax attention.
# --------------------------------------------------------------------------
def _attention_kernel(q_ref, kt_ref, vt_ref, g_ref, o_ref,
                      *, num_heads, head_dim):
    # q_ref : (1, block_q, hidden)  pre-scaled Q tile (compute_dtype)
    # kt_ref: (1, hidden, S)        K^T for the whole sequence (resident/batch)
    # vt_ref: (1, hidden, S)        V^T
    # g_ref : (1, block_q, S) int8  adjacency rows for this query tile
    # o_ref : (1, block_q, hidden)  lane-dense output tile

    # Additive mask bias computed ONCE per query tile (integer compare; the
    # large finite -1e9 matches the reference's (1 - g) * -1e9 convention, so
    # fully-masked rows reduce to a plain softmax of the raw scores).
    bias = jnp.where(g_ref[0] != 0, 0.0, -1e9)               # (block_q, S) f32

    q = q_ref[0]                                             # (block_q, hidden)

    ctx_heads = []
    for h in range(num_heads):                               # small static H
        lo = h * head_dim
        hi = lo + head_dim
        kt_h = kt_ref[0, lo:hi, :]                           # (Dh, S) sublane slice
        vt_h = vt_ref[0, lo:hi, :]                           # (Dh, S)

        # scores: (block_q, S) — NN form, N = S lane-dense
        s = jnp.dot(q[:, lo:hi], kt_h, preferred_element_type=jnp.float32)
        s = s + bias

        # numerically stable softmax, all elementwise math in f32
        s = s - jnp.max(s, axis=-1, keepdims=True)
        p = jnp.exp(s)
        p = p * pl.reciprocal(jnp.sum(p, axis=-1, keepdims=True), approx=True)

        # ctx: (block_q, Dh) — NT form, contraction over S (lane dims)
        ctx_heads.append(
            lax.dot_general(p.astype(vt_h.dtype), vt_h, (((1,), (1,)), ((), ())),
                            preferred_element_type=jnp.float32))

    # single full-width lane-dense store (no per-head masked partial stores)
    o_ref[0] = jnp.concatenate(ctx_heads, axis=-1).astype(o_ref.dtype)


# --------------------------------------------------------------------------
# Wrapper
# --------------------------------------------------------------------------
def graph_attention_forward(input_tensor, graph_matrix, wq, wk, wv, num_heads,
                            *, block_q=None, block_s=None,
                            compute_dtype=jnp.bfloat16,
                            vmem_limit_bytes=None):
    """
    input_tensor : (B, S, hidden) float32
    graph_matrix : (B, S, S) adjacency (int8/bool preferred; others are cast)
    wq/wk/wv     : (hidden, hidden) float32, PyTorch nn.Linear layout
                   (out_features, in_features), so y = x @ W^T
    returns      : (B, S, hidden) float32
                   == permute(0,2,1,3).view(...) of the per-head context.
    """
    B, S, hidden = input_tensor.shape
    head_dim = hidden // num_heads
    assert num_heads * head_dim == hidden
    assert wq.shape == (hidden, hidden) and wk.shape == (hidden, hidden) \
        and wv.shape == (hidden, hidden)

    if block_q is None:
        block_q = S
    assert S % block_q == 0, "block_q must divide S"
    assert block_q == S or block_q % 32 == 0     # int8 adjacency sublane tiling
    if block_s is None:
        block_s = S
    assert S % block_s == 0, "block_s must divide S"
    assert block_s == S or block_s % 128 == 0    # lane dim of the K^T/V^T blocks

    # accept int8/bool adjacency directly (no extra HBM pass); cast otherwise
    graph_i8 = (graph_matrix if graph_matrix.dtype == jnp.int8
                else graph_matrix.astype(jnp.int8))

    # fold 1/sqrt(Dh) into Wq; cast weights to the MXU operand dtype once
    wq_c = (wq * (1.0 / math.sqrt(head_dim))).astype(compute_dtype)
    wk_c = wk.astype(compute_dtype)
    wv_c = wv.astype(compute_dtype)

    cp_kwargs = {}
    if vmem_limit_bytes is not None:
        # raise the scoped VMEM limit for big tiles (v5e/v6e default 16/32 MiB
        # scoped; v7x has only 64 MiB physical — re-derive tiling there).
        cp_kwargs["vmem_limit_bytes"] = vmem_limit_bytes

    c_size = np.dtype(compute_dtype).itemsize
    in_size = np.dtype(input_tensor.dtype).itemsize

    # ---------------- stage 1: projections -------------------------------
    proj_cost = pl.CostEstimate(
        flops=int(6 * B * S * hidden * hidden),
        transcendentals=0,
        bytes_accessed=int(B * S * hidden * in_size
                           + 3 * hidden * hidden * c_size
                           + 3 * B * S * hidden * c_size))
    q, kt, vt = pl.pallas_call(
        functools.partial(_qkv_proj_kernel, compute_dtype=compute_dtype),
        out_shape=(jax.ShapeDtypeStruct((B, S, hidden), compute_dtype),
                   jax.ShapeDtypeStruct((B, hidden, S), compute_dtype),
                   jax.ShapeDtypeStruct((B, hidden, S), compute_dtype)),
        grid_spec=pltpu.PrefetchScalarGridSpec(
            num_scalar_prefetch=0,
            grid=(B, S // block_s),
            in_specs=[
                pl.BlockSpec((1, block_s, hidden), lambda b, s: (b, s, 0)),
                pl.BlockSpec((hidden, hidden), lambda b, s: (0, 0)),   # Wq (scaled)
                pl.BlockSpec((hidden, hidden), lambda b, s: (0, 0)),   # Wk
                pl.BlockSpec((hidden, hidden), lambda b, s: (0, 0)),   # Wv
            ],
            out_specs=[
                pl.BlockSpec((1, block_s, hidden), lambda b, s: (b, s, 0)),
                pl.BlockSpec((1, hidden, block_s), lambda b, s: (b, 0, s)),
                pl.BlockSpec((1, hidden, block_s), lambda b, s: (b, 0, s)),
            ]),
        compiler_params=pltpu.CompilerParams(
            dimension_semantics=("parallel", "parallel"), **cp_kwargs),
        cost_estimate=proj_cost,
    )(input_tensor, wq_c, wk_c, wv_c)

    # ---------------- stage 2: attention ---------------------------------
    attn_cost = pl.CostEstimate(
        flops=int(4 * B * S * S * hidden),
        transcendentals=int(B * num_heads * S * S),
        bytes_accessed=int(3 * B * S * hidden * c_size    # Q, K^T, V^T
                           + B * S * S                    # int8 adjacency
                           + B * S * hidden * in_size))   # output
    out = pl.pallas_call(
        functools.partial(_attention_kernel,
                          num_heads=num_heads, head_dim=head_dim),
        out_shape=jax.ShapeDtypeStruct((B, S, hidden), input_tensor.dtype),
        grid_spec=pltpu.PrefetchScalarGridSpec(
            num_scalar_prefetch=0,
            grid=(B, S // block_q),
            in_specs=[
                pl.BlockSpec((1, block_q, hidden), lambda b, i: (b, i, 0)),  # Q tile
                pl.BlockSpec((1, hidden, S), lambda b, i: (b, 0, 0)),        # K^T / batch
                pl.BlockSpec((1, hidden, S), lambda b, i: (b, 0, 0)),        # V^T / batch
                pl.BlockSpec((1, block_q, S), lambda b, i: (b, i, 0)),       # graph rows
            ],
            out_specs=pl.BlockSpec((1, block_q, hidden), lambda b, i: (b, i, 0))),
        # No cross-tile scratch anymore, so BOTH axes are parallel-safe
        # (query tiles can shard across v7x's two TensorCores).
        compiler_params=pltpu.CompilerParams(
            dimension_semantics=("parallel", "parallel"), **cp_kwargs),
        cost_estimate=attn_cost,
    )(q, kt, vt, graph_i8)
    return out


def _reference(x, graph, wq, wk, wv, num_heads):
    """Pure-JAX reference mirroring the PyTorch forward (eval mode)."""
    B, S, hidden = x.shape
    Dh = hidden // num_heads

    def split(t):  # (B, S, hidden) -> (B, H, S, Dh)  == transpose_for_scores
        return jnp.transpose(t.reshape(B, S, num_heads, Dh), (0, 2, 1, 3))

    q = split(x @ wq.T)
    k = split(x @ wk.T)
    v = split(x @ wv.T)
    scores = jnp.einsum('bhqd,bhkd->bhqk', q, k) / math.sqrt(Dh)
    scores = scores + ((1.0 - graph.astype(jnp.float32)) * -1e9)[:, None]
    probs = jax.nn.softmax(scores, axis=-1)
    ctx = jnp.einsum('bhqk,bhkd->bhqd', probs, v)
    return jnp.transpose(ctx, (0, 2, 1, 3)).reshape(B, S, hidden)


if __name__ == "__main__":
    B, S, hidden, num_heads = 2, 64, 64, 4

    key = jax.random.PRNGKey(0)
    k_x, k_g, k_q, k_k, k_v = jax.random.split(key, 5)

    x = jax.random.normal(k_x, (B, S, hidden), dtype=jnp.float32)
    adj = jax.random.bernoulli(k_g, 0.5, (B, S, S))
    # add self-loops so no row is fully masked (typical for graph attention)
    adj = jnp.logical_or(adj, jnp.eye(S, dtype=bool)[None])
    graph = adj.astype(jnp.int8)

    def make_w(k):  # PyTorch nn.Linear weight layout: (out_features, in_features)
        bound = 1.0 / math.sqrt(hidden)
        return jax.random.uniform(k, (hidden, hidden), jnp.float32, -bound, bound)

    wq, wk, wv = make_w(k_q), make_w(k_k), make_w(k_v)

    ref = _reference(x, graph, wq, wk, wv, num_heads)

    # f32 MXU-operand path (tight tolerance; only the EUP approx reciprocal
    # in the softmax normalizer differs from the reference).
    out_f32 = graph_attention_forward(x, graph, wq, wk, wv, num_heads,
                                      block_q=32, compute_dtype=jnp.float32)
    out_f32 = jax.block_until_ready(out_f32)
    assert out_f32.shape == (B, S, hidden)
    err32 = float(jnp.max(jnp.abs(out_f32 - ref)))
    assert jnp.allclose(out_f32, ref, atol=5e-3, rtol=5e-3), \
        f"f32 mismatch vs reference (max abs err {err32})"

    # bf16 MXU-operand path (default on v5e/v6e/v7x); looser tolerance for
    # bf16 operand rounding (accumulation stays f32).
    out_bf16 = graph_attention_forward(x, graph, wq, wk, wv, num_heads,
                                       block_q=32)
    out_bf16 = jax.block_until_ready(out_bf16)
    errbf = float(jnp.max(jnp.abs(out_bf16 - ref)))
    assert jnp.allclose(out_bf16, ref, atol=3e-2, rtol=3e-2), \
        f"bf16 mismatch vs reference (max abs err {errbf})"

    print("KERNEL_OK")
</pallas_src>

<mosaic_0001>
module attributes {stable_mosaic.version = 11 : i64} {
  func.func @_qkv_proj_kernel(%arg0: i32, %arg1: i32, %arg2: memref<1x64x64xf32, #tpu.memory_space<vmem>>, %arg3: memref<64x64xf32, #tpu.memory_space<vmem>>, %arg4: memref<64x64xf32, #tpu.memory_space<vmem>>, %arg5: memref<64x64xf32, #tpu.memory_space<vmem>>, %arg6: memref<1x64x64xf32, #tpu.memory_space<vmem>>, %arg7: memref<1x64x64xf32, #tpu.memory_space<vmem>>, %arg8: memref<1x64x64xf32, #tpu.memory_space<vmem>>) attributes {dimension_semantics = [#tpu.dimension_semantics<parallel>, #tpu.dimension_semantics<parallel>], iteration_bounds = array<i64: 2, 1>, scalar_prefetch = 0 : i64, scratch_operands = 0 : i64, tpu.core_type = #tpu.core_type<tc>, window_params = [{transform_indices = @transform_0, window_bounds = array<i64: 1, 64, 64>}, {pipeline_mode = #tpu.pipeline_mode<synchronous>, transform_indices = @transform_1, window_bounds = array<i64: 64, 64>}, {pipeline_mode = #tpu.pipeline_mode<synchronous>, transform_indices = @transform_2, window_bounds = array<i64: 64, 64>}, {pipeline_mode = #tpu.pipeline_mode<synchronous>, transform_indices = @transform_3, window_bounds = array<i64: 64, 64>}, {transform_indices = @transform_4, window_bounds = array<i64: 1, 64, 64>}, {transform_indices = @transform_5, window_bounds = array<i64: 1, 64, 64>}, {transform_indices = @transform_6, window_bounds = array<i64: 1, 64, 64>}]} {
    %c0 = arith.constant 0 : index
    %c0_0 = arith.constant 0 : index
    %c0_1 = arith.constant 0 : index
    %0 = vector.load %arg2[%c0, %c0_0, %c0_1] : memref<1x64x64xf32, #tpu.memory_space<vmem>>, vector<1x64x64xf32>
    %1 = vector.shape_cast %0 : vector<1x64x64xf32> to vector<64x64xf32>
    %c0_2 = arith.constant 0 : index
    %c0_3 = arith.constant 0 : index
    %2 = vector.load %arg3[%c0_2, %c0_3] : memref<64x64xf32, #tpu.memory_space<vmem>>, vector<64x64xf32>
    %cst = arith.constant dense<0.000000e+00> : vector<64x64xf32>
    %3 = tpu.matmul %1, %2, %cst {dimension_numbers = #tpu.dot_dimension_numbers<[1], [1], [0], [0], [0, 0, 1, 0], [], []>} : vector<64x64xf32>, vector<64x64xf32>, vector<64x64xf32> -> vector<64x64xf32>
    %c0_4 = arith.constant 0 : index
    %c0_5 = arith.constant 0 : index
    %c0_6 = arith.constant 0 : index
    %4 = vector.load %arg6[%c0_4, %c0_5, %c0_6] : memref<1x64x64xf32, #tpu.memory_space<vmem>>, vector<1x64x64xf32>
    %5 = vector.shape_cast %4 : vector<1x64x64xf32> to vector<64x64xf32>
    %6 = vector.shape_cast %3 : vector<64x64xf32> to vector<1x64x64xf32>
    tpu.vector_store %arg6[%c0_4, %c0_5, %c0_6], %6 {strides = array<i32>} : memref<1x64x64xf32, #tpu.memory_space<vmem>>, vector<1x64x64xf32>,
    %c0_7 = arith.constant 0 : index
    %c0_8 = arith.constant 0 : index
    %7 = vector.load %arg4[%c0_7, %c0_8] : memref<64x64xf32, #tpu.memory_space<vmem>>, vector<64x64xf32>
    %cst_9 = arith.constant dense<0.000000e+00> : vector<64x64xf32>
    %8 = tpu.matmul %7, %1, %cst_9 {dimension_numbers = #tpu.dot_dimension_numbers<[1], [1], [0], [0], [0, 0, 1, 0], [], []>} : vector<64x64xf32>, vector<64x64xf32>, vector<64x64xf32> -> vector<64x64xf32>
    %c0_10 = arith.constant 0 : index
    %c0_11 = arith.constant 0 : index
    %c0_12 = arith.constant 0 : index
    %9 = vector.load %arg7[%c0_10, %c0_11, %c0_12] : memref<1x64x64xf32, #tpu.memory_space<vmem>>, vector<1x64x64xf32>
    %10 = vector.shape_cast %9 : vector<1x64x64xf32> to vector<64x64xf32>
    %11 = vector.shape_cast %8 : vector<64x64xf32> to vector<1x64x64xf32>
    tpu.vector_store %arg7[%c0_10, %c0_11, %c0_12], %11 {strides = array<i32>} : memref<1x64x64xf32, #tpu.memory_space<vmem>>, vector<1x64x64xf32>,
    %c0_13 = arith.constant 0 : index
    %c0_14 = arith.constant 0 : index
    %12 = vector.load %arg5[%c0_13, %c0_14] : memref<64x64xf32, #tpu.memory_space<vmem>>, vector<64x64xf32>
    %cst_15 = arith.constant dense<0.000000e+00> : vector<64x64xf32>
    %13 = tpu.matmul %12, %1, %cst_15 {dimension_numbers = #tpu.dot_dimension_numbers<[1], [1], [0], [0], [0, 0, 1, 0], [], []>} : vector<64x64xf32>, vector<64x64xf32>, vector<64x64xf32> -> vector<64x64xf32>
    %c0_16 = arith.constant 0 : index
    %c0_17 = arith.constant 0 : index
    %c0_18 = arith.constant 0 : index
    %14 = vector.load %arg8[%c0_16, %c0_17, %c0_18] : memref<1x64x64xf32, #tpu.memory_space<vmem>>, vector<1x64x64xf32>
    %15 = vector.shape_cast %14 : vector<1x64x64xf32> to vector<64x64xf32>
    %16 = vector.shape_cast %13 : vector<64x64xf32> to vector<1x64x64xf32>
    tpu.vector_store %arg8[%c0_16, %c0_17, %c0_18], %16 {strides = array<i32>} : memref<1x64x64xf32, #tpu.memory_space<vmem>>, vector<1x64x64xf32>,
    return
  }
  func.func @transform_0(%arg0: i32, %arg1: i32) -> (i32, i32, i32) {
    %c0_i32 = arith.constant 0 : i32
    %c0_i32_0 = arith.constant 0 : i32
    return %arg0, %arg1, %c0_i32 : i32, i32, i32
  }
  func.func @transform_1(%arg0: i32, %arg1: i32) -> (i32, i32) {
    %c0_i32 = arith.constant 0 : i32
    %c0_i32_0 = arith.constant 0 : i32
    %c0_i32_1 = arith.constant 0 : i32
    return %c0_i32, %c0_i32_0 : i32, i32
  }
  func.func @transform_2(%arg0: i32, %arg1: i32) -> (i32, i32) {
    %c0_i32 = arith.constant 0 : i32
    %c0_i32_0 = arith.constant 0 : i32
    %c0_i32_1 = arith.constant 0 : i32
    return %c0_i32, %c0_i32_0 : i32, i32
  }
  func.func @transform_3(%arg0: i32, %arg1: i32) -> (i32, i32) {
    %c0_i32 = arith.constant 0 : i32
    %c0_i32_0 = arith.constant 0 : i32
    %c0_i32_1 = arith.constant 0 : i32
    return %c0_i32, %c0_i32_0 : i32, i32
  }
  func.func @transform_4(%arg0: i32, %arg1: i32) -> (i32, i32, i32) {
    %c0_i32 = arith.constant 0 : i32
    %c0_i32_0 = arith.constant 0 : i32
    return %arg0, %arg1, %c0_i32 : i32, i32, i32
  }
  func.func @transform_5(%arg0: i32, %arg1: i32) -> (i32, i32, i32) {
    %c0_i32 = arith.constant 0 : i32
    %c0_i32_0 = arith.constant 0 : i32
    return %arg0, %c0_i32, %arg1 : i32, i32, i32
  }
  func.func @transform_6(%arg0: i32, %arg1: i32) -> (i32, i32, i32) {
    %c0_i32 = arith.constant 0 : i32
    %c0_i32_0 = arith.constant 0 : i32
    return %arg0, %c0_i32, %arg1 : i32, i32, i32
  }
}

</mosaic_0001>

<llo_original>
// kernel: tpu_custom_call.1
$region0: #{tpu_custom_call.1}
  #allocation0 [shape = 'u32[]', space=smem, size = 0x4, offset = 0x4, fixed_abs, tag = 'smem constant byte address 0x4 - core index']
  #allocation1 [shape = 'u32[144,128]{1,0:T(1,128)}', space=vmem, size = 0x12000, scoped, tag = 'internal scratch']
  %s0 = inlined_call_operand.hbm [shape: f32[2,64,64], index: 0, kind: input, shape index: {}]
  %s1 = inlined_call_operand.hbm [shape: f32[64,64], index: 1, kind: input, shape index: {}]
  %s2 = inlined_call_operand.hbm [shape: f32[64,64], index: 2, kind: input, shape index: {}]
  %s3 = inlined_call_operand.hbm [shape: f32[64,64], index: 3, kind: input, shape index: {}]
  %s4 = inlined_call_operand.hbm [shape: f32[2,64,64], index: 4, kind: output, shape index: {0}]
  %s5 = inlined_call_operand.hbm [shape: f32[2,64,64], index: 5, kind: output, shape index: {1}]
  %s6 = inlined_call_operand.hbm [shape: f32[2,64,64], index: 6, kind: output, shape index: {2}]
  %7 = xla_tuple %s4, %s5, %s6
  %s8 = sld [smem:[#allocation0]]
  $region81: #{tpu_custom_call.1} parent=0
    _
  %s10 = ssub.s32 1, %s8
  %s11 = scalar_select 0, %s10, %s8
  $region1: #{tpu_custom_call.1} parent=0
    #allocation2 [shape = 'u8[65536]{0}', space=vmem, size = 0x10000, scoped, tag = 'input window, operand 0']
    #allocation3 [shape = 's32[2]{0}', space=sflag, size = 0x8, scoped, tag = 'scoped memory for tpu_custom_call.1']
    #allocation4 [shape = 's32[2]{0}', space=sflag, size = 0x8, scoped, tag = 'scoped memory for tpu_custom_call.1']
    #allocation5 [shape = 'u8[32768]{0}', space=vmem, size = 0x8000, scoped, tag = 'input window, operand 1, single buffered']
    #allocation6 [shape = 's32[1]{0}', space=sflag, size = 0x4, scoped, tag = 'scoped memory for tpu_custom_call.1']
    #allocation7 [shape = 'u8[32768]{0}', space=vmem, size = 0x8000, scoped, tag = 'input window, operand 2, single buffered']
    #allocation8 [shape = 'u8[32768]{0}', space=vmem, size = 0x8000, scoped, tag = 'input window, operand 3, single buffered']
    #allocation9 [shape = 's32[1]{0}', space=sflag, size = 0x4, scoped, tag = 'scoped memory for tpu_custom_call.1']
    #allocation10 [shape = 'u8[65536]{0}', space=vmem, size = 0x10000, scoped, tag = 'output window, operand 0']
    #allocation11 [shape = 'u8[65536]{0}', space=vmem, size = 0x10000, scoped, tag = 'output window, operand 1']
    #allocation12 [shape = 's32[2]{0}', space=sflag, size = 0x8, scoped, tag = 'scoped memory for tpu_custom_call.1']
    #allocation13 [shape = 'u8[65536]{0}', space=vmem, size = 0x10000, scoped, tag = 'output window, operand 2']
    %12 = vsyncpa [#allocation3], 0
    %s13 = scalar_lea.sflag [#allocation3], 1
    %14 = vsyncpa %s13, 0
    %15 = vsyncpa [#allocation6], 0
    %16 = vsyncpa [#allocation9], 0
    %17 = vsyncpa [#allocation4], 0
    %s18 = scalar_lea.sflag [#allocation4], 1
    %19 = vsyncpa %s18, 0
    %20 = vsyncpa [#allocation12], 0
    %s21 = scalar_lea.sflag [#allocation12], 1
    %22 = vsyncpa %s21, 0
    loop: start=0, step=1, limit=4
    $region2: #{tpu_custom_call.1} parent=1 // loop_pre_header
      _
    $region3: #{tpu_custom_call.1} parent=1 // loop_header
      %s24 = sphi 0, %s28
      %p25 = scmp.ge.s32.totalorder %s24, 4
      %s31 = sphi 0, %s43
      %s32 = sphi 0, %s39
      %s33 = sphi 0, %s31
      %s34 = sphi 0, %s32
      %s35 = sphi 0, %s33
      %s36 = sphi 0, %s34
      %s48 = sphi 0, %s50
      %s51 = sphi 0, %s48
      %s52 = sphi 0, %s51
      %s68 = sphi 0, %s52
      %s72 = sphi 0, %s72
      %s74 = sphi 0, %s72
      %s75 = sphi 0, %s74
      %s89 = sphi 0, %s75
      %s93 = sphi 0, %s93
      %s95 = sphi 0, %s93
      %s96 = sphi 0, %s95
      %s110 = sphi 0, %s96
      %s114 = sphi 0, %s114
      %s116 = sphi 0, %s114
      %s117 = sphi 0, %s116
      %s131 = sphi 0, %s117
      %s139 = sphi 0, %s141
      %s142 = sphi 0, %s139
      %s143 = sphi 0, %s142
      %s159 = sphi 0, %s143
      %s167 = sphi 0, %s169
      %s170 = sphi 0, %s167
      %s171 = sphi 0, %s170
      %s187 = sphi 0, %s171
      %s195 = sphi 0, %s197
      %s198 = sphi 0, %s195
      %s199 = sphi 0, %s198
      %s215 = sphi 0, %s199
    $region4: #{tpu_custom_call.1} parent=1 // loop_header_branch
      %27 = sbr.rel (%p25) target = $region8
    $region5: #{tpu_custom_call.1} parent=1 // loop_body
      %s29 = ssub.s32 %s24, 1
      %s30 = ssub.s32 %s24, 2
      %s37 = sadd.s32 1, %s32
      %p38 = scmp.ge.s32.totalorder %s37, 1
      %s39 = scalar_select %p38, 0, %s37
      %s40 = sadd.s32 1, %s31
      %s41 = scalar_select %p38, %s40, %s31
      %p42 = scmp.ge.s32.totalorder %s41, 2
      %s43 = scalar_select %p42, 0, %s41
      %s44 = ssub.s32 %s31, %s43
      %s45 = ssub.s32 %s32, %s39
      %s46 = sor.u32 %s44, %s45
      %p47 = scmp.eq.s32.totalorder %s46, 0
      %s49 = sadd.s32 %s48, 1
      %s50 = scalar_select %p47, %s48, %s49
      %p53 = pneg %p47
      %p54 = scmp.eq.s32.totalorder %s24, 1
      %p55 = por %p53, %p54
      %p56 = scmp.ne.s32.totalorder %s48, %s51
      %p57 = scmp.eq.s32.totalorder %s24, 0
      %p58 = por %p56, %p57
      %p59 = scmp.ne.s32.totalorder %s48, %s51
      %p60 = scmp.eq.s32.totalorder %s29, 1
      %p61 = por %p59, %p60
      %p62 = scmp.ne.s32.totalorder %s51, %s52
      %p63 = scmp.eq.s32.totalorder %s29, 0
      %p64 = por %p62, %p63
      %p65 = scmp.ne.s32.totalorder %s51, %s52
      %p66 = scmp.eq.s32.totalorder %s30, 1
      %p67 = por %p65, %p66
      %p69 = scmp.ne.s32.totalorder %s52, %s68
      %p70 = scmp.eq.s32.totalorder %s30, 0
      %p71 = por %p69, %p70
      %s73 = sadd.s32 %s72, 1
      %p76 = scmp.eq.s32.totalorder %s24, 1
      %p77 = scmp.ne.s32.totalorder %s72, %s74
      %p78 = scmp.eq.s32.totalorder %s24, 0
      %p79 = por %p77, %p78
      %p80 = scmp.ne.s32.totalorder %s72, %s74
      %p81 = scmp.eq.s32.totalorder %s29, 1
      %p82 = por %p80, %p81
      %p83 = scmp.ne.s32.totalorder %s74, %s75
      %p84 = scmp.eq.s32.totalorder %s29, 0
      %p85 = por %p83, %p84
      %p86 = scmp.ne.s32.totalorder %s74, %s75
      %p87 = scmp.eq.s32.totalorder %s30, 1
      %p88 = por %p86, %p87
      %p90 = scmp.ne.s32.totalorder %s75, %s89
      %p91 = scmp.eq.s32.totalorder %s30, 0
      %p92 = por %p90, %p91
      %s94 = sadd.s32 %s93, 1
      %p97 = scmp.eq.s32.totalorder %s24, 1
      %p98 = scmp.ne.s32.totalorder %s93, %s95
      %p99 = scmp.eq.s32.totalorder %s24, 0
      %p100 = por %p98, %p99
      %p101 = scmp.ne.s32.totalorder %s93, %s95
      %p102 = scmp.eq.s32.totalorder %s29, 1
      %p103 = por %p101, %p102
      %p104 = scmp.ne.s32.totalorder %s95, %s96
      %p105 = scmp.eq.s32.totalorder %s29, 0
      %p106 = por %p104, %p105
      %p107 = scmp.ne.s32.totalorder %s95, %s96
      %p108 = scmp.eq.s32.totalorder %s30, 1
      %p109 = por %p107, %p108
      %p111 = scmp.ne.s32.totalorder %s96, %s110
      %p112 = scmp.eq.s32.totalorder %s30, 0
      %p113 = por %p111, %p112
      %s115 = sadd.s32 %s114, 1
      %p118 = scmp.eq.s32.totalorder %s24, 1
      %p119 = scmp.ne.s32.totalorder %s114, %s116
      %p120 = scmp.eq.s32.totalorder %s24, 0
      %p121 = por %p119, %p120
      %p122 = scmp.ne.s32.totalorder %s114, %s116
      %p123 = scmp.eq.s32.totalorder %s29, 1
      %p124 = por %p122, %p123
      %p125 = scmp.ne.s32.totalorder %s116, %s117
      %p126 = scmp.eq.s32.totalorder %s29, 0
      %p127 = por %p125, %p126
      %p128 = scmp.ne.s32.totalorder %s116, %s117
      %p129 = scmp.eq.s32.totalorder %s30, 1
      %p130 = por %p128, %p129
      %p132 = scmp.ne.s32.totalorder %s117, %s131
      %p133 = scmp.eq.s32.totalorder %s30, 0
      %p134 = por %p132, %p133
      %s135 = ssub.s32 %s31, %s43
      %s136 = ssub.s32 %s32, %s39
      %s137 = sor.u32 %s135, %s136
      %p138 = scmp.eq.s32.totalorder %s137, 0
      %s140 = sadd.s32 %s139, 1
      %s141 = scalar_select %p138, %s139, %s140
      %p144 = pneg %p138
      %p145 = scmp.eq.s32.totalorder %s24, 1
      %p146 = por %p144, %p145
      %p147 = scmp.ne.s32.totalorder %s139, %s142
      %p148 = scmp.eq.s32.totalorder %s24, 0
      %p149 = por %p147, %p148
      %p150 = scmp.ne.s32.totalorder %s139, %s142
      %p151 = scmp.eq.s32.totalorder %s29, 1
      %p152 = por %p150, %p151
      %p153 = scmp.ne.s32.totalorder %s142, %s143
      %p154 = scmp.eq.s32.totalorder %s29, 0
      %p155 = por %p153, %p154
      %p156 = scmp.ne.s32.totalorder %s142, %s143
      %p157 = scmp.eq.s32.totalorder %s30, 1
      %p158 = por %p156, %p157
      %p160 = scmp.ne.s32.totalorder %s143, %s159
      %p161 = scmp.eq.s32.totalorder %s30, 0
      %p162 = por %p160, %p161
      %s163 = ssub.s32 %s31, %s43
      %s164 = ssub.s32 %s32, %s39
      %s165 = sor.u32 %s163, %s164
      %p166 = scmp.eq.s32.totalorder %s165, 0
      %s168 = sadd.s32 %s167, 1
      %s169 = scalar_select %p166, %s167, %s168
      %p172 = pneg %p166
      %p173 = scmp.eq.s32.totalorder %s24, 1
      %p174 = por %p172, %p173
      %p175 = scmp.ne.s32.totalorder %s167, %s170
      %p176 = scmp.eq.s32.totalorder %s24, 0
      %p177 = por %p175, %p176
      %p178 = scmp.ne.s32.totalorder %s167, %s170
      %p179 = scmp.eq.s32.totalorder %s29, 1
      %p180 = por %p178, %p179
      %p181 = scmp.ne.s32.totalorder %s170, %s171
      %p182 = scmp.eq.s32.totalorder %s29, 0
      %p183 = por %p181, %p182
      %p184 = scmp.ne.s32.totalorder %s170, %s171
      %p185 = scmp.eq.s32.totalorder %s30, 1
      %p186 = por %p184, %p185
      %p188 = scmp.ne.s32.totalorder %s171, %s187
      %p189 = scmp.eq.s32.totalorder %s30, 0
      %p190 = por %p188, %p189
      %s191 = ssub.s32 %s31, %s43
      %s192 = ssub.s32 %s32, %s39
      %s193 = sor.u32 %s191, %s192
      %p194 = scmp.eq.s32.totalorder %s193, 0
      %s196 = sadd.s32 %s195, 1
      %s197 = scalar_select %p194, %s195, %s196
      %p200 = pneg %p194
      %p201 = scmp.eq.s32.totalorder %s24, 1
      %p202 = por %p200, %p201
      %p203 = scmp.ne.s32.totalorder %s195, %s198
      %p204 = scmp.eq.s32.totalorder %s24, 0
      %p205 = por %p203, %p204
      %p206 = scmp.ne.s32.totalorder %s195, %s198
      %p207 = scmp.eq.s32.totalorder %s29, 1
      %p208 = por %p206, %p207
      %p209 = scmp.ne.s32.totalorder %s198, %s199
      %p210 = scmp.eq.s32.totalorder %s29, 0
      %p211 = por %p209, %p210
      %p212 = scmp.ne.s32.totalorder %s198, %s199
      %p213 = scmp.eq.s32.totalorder %s30, 1
      %p214 = por %p212, %p213
      %p216 = scmp.ne.s32.totalorder %s199, %s215
      %p217 = scmp.eq.s32.totalorder %s30, 0
      %p218 = por %p216, %p217
      %p219 = scmp.le.s32.totalorder 1, %s24
      %p220 = scmp.lt.s32.totalorder %s24, 3
      %p221 = pnand %p219, %p220
      %p222 = pneg %p221
      // Predicated region
      $region9: #{tpu_custom_call.1} parent=5 // pred_check
        _
      $region10: #{tpu_custom_call.1} parent=5 // pred_check_branch
        %224 = sbr.rel (%p221) target = $region12
      $region11: #{tpu_custom_call.1} parent=5 // pred_region
        %s225 = ssub.s32 %s24, 1
        // Predicated region
        $region13: #{tpu_custom_call.1} parent=11 // pred_check
          %p226 = pneg %p85
        $region14: #{tpu_custom_call.1} parent=11 // pred_check_branch
          %228 = sbr.rel (%p226) target = $region16
        $region15: #{tpu_custom_call.1} parent=11 // pred_region
          %s230 = ssub.s32 1024, 1024
          %231 = vsyncadd [#allocation6], %s230
          %s232 = sshll.u32 [#allocation5], 4
          %s233 = int_to_ptr.vmem [resolvable:$true] %s232
          %238 = dma.hbm_to_vmem [thread:$0]  %s1, 1024, %s233, [#allocation6], 128, 128, 8
        $region16: #{tpu_custom_call.1} parent=11 // pred_fallthru
          _
        // Predicated region
        $region17: #{tpu_custom_call.1} parent=11 // pred_check
          %p239 = pneg %p106
        $region18: #{tpu_custom_call.1} parent=11 // pred_check_branch
          %241 = sbr.rel (%p239) target = $region20
        $region19: #{tpu_custom_call.1} parent=11 // pred_region
          %s243 = ssub.s32 1024, 1024
          %244 = vsyncadd [#allocation6], %s243
          %s245 = sshll.u32 [#allocation7], 4
          %s246 = int_to_ptr.vmem [resolvable:$true] %s245
          %251 = dma.hbm_to_vmem [thread:$0]  %s2, 1024, %s246, [#allocation6], 128, 128, 8
        $region20: #{tpu_custom_call.1} parent=11 // pred_fallthru
          _
        // Predicated region
        $region21: #{tpu_custom_call.1} parent=11 // pred_check
          %p252 = pneg %p127
        $region22: #{tpu_custom_call.1} parent=11 // pred_check_branch
          %254 = sbr.rel (%p252) target = $region24
        $region23: #{tpu_custom_call.1} parent=11 // pred_region
          %s256 = ssub.s32 1024, 1024
          %257 = vsyncadd [#allocation9], %s256
          %s258 = sshll.u32 [#allocation8], 4
          %s259 = int_to_ptr.vmem [resolvable:$true] %s258
          %264 = dma.hbm_to_vmem [thread:$0]  %s3, 1024, %s259, [#allocation9], 128, 128, 8
        $region24: #{tpu_custom_call.1} parent=11 // pred_fallthru
          _
      $region12: #{tpu_custom_call.1} parent=5 // pred_fallthru
        _
      %p265 = scmp.lt.s32.totalorder %s24, 2
      // Predicated region
      $region25: #{tpu_custom_call.1} parent=5 // pred_check
        %p266 = pneg %p265
      $region26: #{tpu_custom_call.1} parent=5 // pred_check_branch
        %268 = sbr.rel (%p266) target = $region28
      $region27: #{tpu_custom_call.1} parent=5 // pred_region
        // Predicated region
        $region29: #{tpu_custom_call.1} parent=27 // pred_check
          %p269 = pneg %p58
        $region30: #{tpu_custom_call.1} parent=27 // pred_check_branch
          %271 = sbr.rel (%p269) target = $region32
        $region31: #{tpu_custom_call.1} parent=27 // pred_region
          %s272 = sand.u32 %s48, 1
          %s273 = scalar_lea.sflag [#allocation3], %s272
          %s274 = sand.u32 %s48, 1
          %s275 = smul.addr %s274, 64
          %s276 = scalar_lea.vmem [#allocation2], %s275
          %s277 = smul.u32 8, %s32
          %s279 = ssub.s32 1024, 1024
          %280 = vsyncadd %s273, %s279
          %s281 = smul.addr %s31, 8
          %s282 = sadd.s32 %s277, %s281
          %s283 = smul.addr %s282, 128
          %s284 = scalar_lea.hbm %s0, %s283
          %s285 = sshll.u32 %s276, 4
          %s286 = int_to_ptr.vmem [resolvable:$true] %s285
          %291 = dma.hbm_to_vmem [thread:$0]  %s284, 1024, %s286, %s273, 128, 128, 8
        $region32: #{tpu_custom_call.1} parent=27 // pred_fallthru
          _
      $region28: #{tpu_custom_call.1} parent=5 // pred_fallthru
        _
      %p292 = scmp.le.s32.totalorder 1, %s24
      %p293 = scmp.lt.s32.totalorder %s24, 3
      %p294 = pnand %p292, %p293
      %p295 = pneg %p294
      // Predicated region
      $region33: #{tpu_custom_call.1} parent=5 // pred_check
        _
      $region34: #{tpu_custom_call.1} parent=5 // pred_check_branch
        %297 = sbr.rel (%p294) target = $region36
      $region35: #{tpu_custom_call.1} parent=5 // pred_region
        %s298 = ssub.s32 %s24, 1
        %s299 = sand.u32 %s51, 1
        %s300 = scalar_lea.sflag [#allocation3], %s299
        %s301 = sand.u32 %s51, 1
        %s302 = smul.addr %s301, 64
        %s303 = scalar_lea.vmem [#allocation2], %s302
        // Predicated region
        $region37: #{tpu_custom_call.1} parent=35 // pred_check
          %p304 = pneg %p64
        $region38: #{tpu_custom_call.1} parent=35 // pred_check_branch
          %306 = sbr.rel (%p304) target = $region40
        $region39: #{tpu_custom_call.1} parent=35 // pred_region
          %307 = dma.done %s300, 1024
        $region40: #{tpu_custom_call.1} parent=35 // pred_fallthru
          _
        // Predicated region
        $region41: #{tpu_custom_call.1} parent=35 // pred_check
          %p308 = pneg %p85
        $region42: #{tpu_custom_call.1} parent=35 // pred_check_branch
          %310 = sbr.rel (%p308) target = $region44
        $region43: #{tpu_custom_call.1} parent=35 // pred_region
          %311 = dma.done [#allocation6], 1024
        $region44: #{tpu_custom_call.1} parent=35 // pred_fallthru
          _
        // Predicated region
        $region45: #{tpu_custom_call.1} parent=35 // pred_check
          %p312 = pneg %p106
        $region46: #{tpu_custom_call.1} parent=35 // pred_check_branch
          %314 = sbr.rel (%p312) target = $region48
        $region47: #{tpu_custom_call.1} parent=35 // pred_region
          %315 = dma.done [#allocation6], 1024
        $region48: #{tpu_custom_call.1} parent=35 // pred_fallthru
          _
        // Predicated region
        $region49: #{tpu_custom_call.1} parent=35 // pred_check
          %p316 = pneg %p127
        $region50: #{tpu_custom_call.1} parent=35 // pred_check_branch
          %318 = sbr.rel (%p316) target = $region52
        $region51: #{tpu_custom_call.1} parent=35 // pred_region
          %319 = dma.done [#allocation9], 1024
        $region52: #{tpu_custom_call.1} parent=35 // pred_fallthru
          _
        %s320 = sand.u32 %s51, 1
        %s321 = scalar_lea.sflag [#allocation3], %s320
        %s322 = sand.u32 %s51, 1
        %s323 = smul.addr %s322, 64
        %s324 = scalar_lea.vmem [#allocation2], %s323
        %p325 = pneg %p64
        %p326 = pneg %p61
        %p327 = pneg %p85
        %p328 = pneg %p82
        %p329 = pneg %p106
        %p330 = pneg %p103
        %p331 = pneg %p127
        %p332 = pneg %p124
        %p333 = pneg %p155
        %p334 = pneg %p152
        %s335 = sand.u32 %s142, 1
        %s336 = scalar_lea.sflag [#allocation4], %s335
        %s337 = sand.u32 %s142, 1
        %s338 = smul.addr %s337, 64
        %s339 = scalar_lea.vmem [#allocation10], %s338
        %p340 = pneg %p183
        %p341 = pneg %p180
        %s342 = sand.u32 %s29, 1
        %s343 = scalar_lea.sflag [#allocation12], %s342
        %s344 = sand.u32 %s170, 1
        %s345 = smul.addr %s344, 64
        %s346 = scalar_lea.vmem [#allocation11], %s345
        %p347 = pneg %p211
        %p348 = pneg %p208
        %s349 = sand.u32 %s29, 1
        %s350 = scalar_lea.sflag [#allocation12], %s349
        %s351 = sand.u32 %s198, 1
        %s352 = smul.addr %s351, 64
        %s353 = scalar_lea.vmem [#allocation13], %s352
        %s354 = smul.u32 8, %s34
        %s355 = smul.u32 8, %s34
        %v356 = vld [vmem:[%s303] sm:$0xff]
        %v357 = vld [vmem:[%s303 + $0x8] sm:$0xff]
        %v358 = vld [vmem:[%s303 + $0x10] sm:$0xff]
        %v359 = vld [vmem:[%s303 + $0x18] sm:$0xff]
        %v360 = vld [vmem:[%s303 + $0x20] sm:$0xff]
        %v361 = vld [vmem:[%s303 + $0x28] sm:$0xff]
        %v362 = vld [vmem:[%s303 + $0x30] sm:$0xff]
        %v363 = vld [vmem:[%s303 + $0x38] sm:$0xff]
        %v364 = vld [vmem:[#allocation5] sm:$0xff]
        %v365 = vld [vmem:[#allocation5 + $0x8] sm:$0xff]
        %v366 = vld [vmem:[#allocation5 + $0x10] sm:$0xff]
        %v367 = vld [vmem:[#allocation5 + $0x18] sm:$0xff]
        %v368 = vld [vmem:[#allocation5 + $0x20] sm:$0xff]
        %v369 = vld [vmem:[#allocation5 + $0x28] sm:$0xff]
        %v370 = vld [vmem:[#allocation5 + $0x30] sm:$0xff]
        %v371 = vld [vmem:[#allocation5 + $0x38] sm:$0xff]
        %vm372 = vcmask 523264
        %v374 = vsel %vm372, %v356, 0
        %v377 = vsel %vm372, %v357, 0
        %v380 = vsel %vm372, %v358, 0
        %v383 = vsel %vm372, %v359, 0
        %v386 = vsel %vm372, %v360, 0
        %v389 = vsel %vm372, %v361, 0
        %v392 = vsel %vm372, %v362, 0
        %v395 = vsel %vm372, %v363, 0
        %v398 = vsel %vm372, %v364, 0
        %v401 = vsel %vm372, %v365, 0
        %v404 = vsel %vm372, %v366, 0
        %v407 = vsel %vm372, %v367, 0
        %v410 = vsel %vm372, %v368, 0
        %v413 = vsel %vm372, %v369, 0
        %v416 = vsel %vm372, %v370, 0
        %v419 = vsel %vm372, %v371, 0
        %421 = vmatprep.subr.mxu0 0.0
        %422 = vmatpush1.xpose.msra.mxu0 0.0
        %423 = vmatprep.subr.mxu0 0.0
        %424 = vmatpush1.xpose.msra.mxu0 0.0
        %425 = vmatprep.subr.mxu0 0.0
        %426 = vmatpush1.xpose.msra.mxu0 0.0
        %427 = vmatprep.subr.mxu0 0.0
        %428 = vmatpush1.xpose.msra.mxu0 0.0
        %429 = vmatprep.subr.mxu0 0.0
        %430 = vmatpush1.xpose.msra.mxu0 0.0
        %431 = vmatprep.subr.mxu0 0.0
        %432 = vmatpush1.xpose.msra.mxu0 0.0
        %433 = vmatprep.subr.mxu0 0.0
        %434 = vmatpush1.xpose.msra.mxu0 0.0
        %435 = vmatprep.subr.mxu0 0.0
        %436 = vmatpush1.xpose.msra.mxu0 0.0
        %437 = vmatprep.subr.mxu0 0.0
        %438 = vmatpush1.xpose.msra.mxu0 %v419
        %439 = vmatprep.subr.mxu0 0.0
        %440 = vmatpush1.xpose.msra.mxu0 %v416
        %441 = vmatprep.subr.mxu0 0.0
        %442 = vmatpush1.xpose.msra.mxu0 %v413
        %443 = vmatprep.subr.mxu0 0.0
        %444 = vmatpush1.xpose.msra.mxu0 %v410
        %445 = vmatprep.subr.mxu0 0.0
        %446 = vmatpush1.xpose.msra.mxu0 %v407
        %447 = vmatprep.subr.mxu0 0.0
        %448 = vmatpush1.xpose.msra.mxu0 %v404
        %449 = vmatprep.subr.mxu0 0.0
        %450 = vmatpush1.xpose.msra.mxu0 %v401
        %451 = vmatprep.subr.mxu0 0.0
        %452 = vmatpush1.xpose.msra.mxu0 %v398
        %453 = vmatprep.subr.mxu0 0.0
        %454 = vmatpush2.xpose.msra.mxu0 0.0
        %455 = vmatprep.subr.mxu0 0.0
        %456 = vmatpush2.xpose.msra.mxu0 0.0
        %457 = vmatprep.subr.mxu0 0.0
        %458 = vmatpush2.xpose.msra.mxu0 0.0
        %459 = vmatprep.subr.mxu0 0.0
        %460 = vmatpush2.xpose.msra.mxu0 0.0
        %461 = vmatprep.subr.mxu0 0.0
        %462 = vmatpush2.xpose.msra.mxu0 0.0
        %463 = vmatprep.subr.mxu0 0.0
        %464 = vmatpush2.xpose.msra.mxu0 0.0
        %465 = vmatprep.subr.mxu0 0.0
        %466 = vmatpush2.xpose.msra.mxu0 0.0
        %467 = vmatprep.subr.mxu0 0.0
        %468 = vmatpush2.xpose.msra.mxu0 0.0
        %469 = vmatprep.subr.mxu0 0.0
        %470 = vmatpush2.xpose.msra.mxu0 0.0
        %471 = vmatprep.subr.mxu0 0.0
        %472 = vmatpush2.xpose.msra.mxu0 0.0
        %473 = vmatprep.subr.mxu0 0.0
        %474 = vmatpush2.xpose.msra.mxu0 0.0
        %475 = vmatprep.subr.mxu0 0.0
        %476 = vmatpush2.xpose.msra.mxu0 0.0
        %477 = vmatprep.subr.mxu0 0.0
        %478 = vmatpush2.xpose.msra.mxu0 0.0
        %479 = vmatprep.subr.mxu0 0.0
        %480 = vmatpush2.xpose.msra.mxu0 0.0
        %481 = vmatprep.subr.mxu0 0.0
        %482 = vmatpush2.xpose.msra.mxu0 0.0
        %483 = vmatprep.subr.mxu0 0.0
        %484 = vmatpush2.xpose.msra.mxu0 0.0
        %485 = vmatprep.mubr.f32.mxu0 0.0
        %486 = vmatmul.mubr.f32.gmra.mxu0 %v374
        %v487 = vpop.f32.mrf.mxu0
        %v488 = vadd.f32 0.0, %v487
        %v489 = vpop.f32.mrf.mxu0
        %490 = vmatprep.mubr.f32.mxu0 0.0
        %491 = vmatmul.mubr.f32.gmra.mxu0 %v377
        %v492 = vpop.f32.mrf.mxu0
        %v493 = vadd.f32 0.0, %v492
        %v494 = vpop.f32.mrf.mxu0
        %495 = vmatprep.mubr.f32.mxu0 0.0
        %496 = vmatmul.mubr.f32.gmra.mxu0 %v380
        %v497 = vpop.f32.mrf.mxu0
        %v498 = vadd.f32 0.0, %v497
        %v499 = vpop.f32.mrf.mxu0
        %500 = vmatprep.mubr.f32.mxu0 0.0
        %501 = vmatmul.mubr.f32.gmra.mxu0 %v383
        %v502 = vpop.f32.mrf.mxu0
        %v503 = vadd.f32 0.0, %v502
        %v504 = vpop.f32.mrf.mxu0
        %505 = vmatprep.mubr.f32.mxu0 0.0
        %506 = vmatmul.mubr.f32.gmra.mxu0 %v386
        %v507 = vpop.f32.mrf.mxu0
        %v508 = vadd.f32 0.0, %v507
        %v509 = vpop.f32.mrf.mxu0
        %510 = vmatprep.mubr.f32.mxu0 0.0
        %511 = vmatmul.mubr.f32.gmra.mxu0 %v389
        %v512 = vpop.f32.mrf.mxu0
        %v513 = vadd.f32 0.0, %v512
        %v514 = vpop.f32.mrf.mxu0
        %515 = vmatprep.mubr.f32.mxu0 0.0
        %516 = vmatmul.mubr.f32.gmra.mxu0 %v392
        %v517 = vpop.f32.mrf.mxu0
        %v518 = vadd.f32 0.0, %v517
        %v519 = vpop.f32.mrf.mxu0
        %520 = vmatprep.mubr.f32.mxu0 0.0
        %521 = vmatmul.mubr.f32.gmra.mxu0 %v395
        %v522 = vpop.f32.mrf.mxu0
        %v523 = vadd.f32 0.0, %v522
        %v524 = vpop.f32.mrf.mxu0
        %525 = vdwg.mxu0
        %526 = vst.msk [vmem:[%s339] sm:$0xff] %vm372, %v488
        %527 = vst.msk [vmem:[%s339 + $0x8] sm:$0xff] %vm372, %v493
        %528 = vst.msk [vmem:[%s339 + $0x10] sm:$0xff] %vm372, %v498
        %529 = vst.msk [vmem:[%s339 + $0x18] sm:$0xff] %vm372, %v503
        %530 = vst.msk [vmem:[%s339 + $0x20] sm:$0xff] %vm372, %v508
        %531 = vst.msk [vmem:[%s339 + $0x28] sm:$0xff] %vm372, %v513
        %532 = vst.msk [vmem:[%s339 + $0x30] sm:$0xff] %vm372, %v518
        %533 = vst.msk [vmem:[%s339 + $0x38] sm:$0xff] %vm372, %v523
        %v534 = vld [vmem:[#allocation7] sm:$0xff]
        %v535 = vld [vmem:[#allocation7 + $0x8] sm:$0xff]
        %v536 = vld [vmem:[#allocation7 + $0x10] sm:$0xff]
        %v537 = vld [vmem:[#allocation7 + $0x18] sm:$0xff]
        %v538 = vld [vmem:[#allocation7 + $0x20] sm:$0xff]
        %v539 = vld [vmem:[#allocation7 + $0x28] sm:$0xff]
        %v540 = vld [vmem:[#allocation7 + $0x30] sm:$0xff]
        %v541 = vld [vmem:[#allocation7 + $0x38] sm:$0xff]
        %v543 = vsel %vm372, %v534, 0
        %v546 = vsel %vm372, %v535, 0
        %v549 = vsel %vm372, %v536, 0
        %v552 = vsel %vm372, %v537, 0
        %v555 = vsel %vm372, %v538, 0
        %v558 = vsel %vm372, %v539, 0
        %v561 = vsel %vm372, %v540, 0
        %v564 = vsel %vm372, %v541, 0
        %566 = vmatprep.subr.mxu0 0.0
        %567 = vmatpush1.xpose.msra.mxu0 0.0
        %568 = vmatprep.subr.mxu0 0.0
        %569 = vmatpush1.xpose.msra.mxu0 0.0
        %570 = vmatprep.subr.mxu0 0.0
        %571 = vmatpush1.xpose.msra.mxu0 0.0
        %572 = vmatprep.subr.mxu0 0.0
        %573 = vmatpush1.xpose.msra.mxu0 0.0
        %574 = vmatprep.subr.mxu0 0.0
        %575 = vmatpush1.xpose.msra.mxu0 0.0
        %576 = vmatprep.subr.mxu0 0.0
        %577 = vmatpush1.xpose.msra.mxu0 0.0
        %578 = vmatprep.subr.mxu0 0.0
        %579 = vmatpush1.xpose.msra.mxu0 0.0
        %580 = vmatprep.subr.mxu0 0.0
        %581 = vmatpush1.xpose.msra.mxu0 0.0
        %582 = vmatprep.subr.mxu0 0.0
        %583 = vmatpush1.xpose.msra.mxu0 %v395
        %584 = vmatprep.subr.mxu0 0.0
        %585 = vmatpush1.xpose.msra.mxu0 %v392
        %586 = vmatprep.subr.mxu0 0.0
        %587 = vmatpush1.xpose.msra.mxu0 %v389
        %588 = vmatprep.subr.mxu0 0.0
        %589 = vmatpush1.xpose.msra.mxu0 %v386
        %590 = vmatprep.subr.mxu0 0.0
        %591 = vmatpush1.xpose.msra.mxu0 %v383
        %592 = vmatprep.subr.mxu0 0.0
        %593 = vmatpush1.xpose.msra.mxu0 %v380
        %594 = vmatprep.subr.mxu0 0.0
        %595 = vmatpush1.xpose.msra.mxu0 %v377
        %596 = vmatprep.subr.mxu0 0.0
        %597 = vmatpush1.xpose.msra.mxu0 %v374
        %598 = vmatprep.subr.mxu0 0.0
        %599 = vmatpush2.xpose.msra.mxu0 0.0
        %600 = vmatprep.subr.mxu0 0.0
        %601 = vmatpush2.xpose.msra.mxu0 0.0
        %602 = vmatprep.subr.mxu0 0.0
        %603 = vmatpush2.xpose.msra.mxu0 0.0
        %604 = vmatprep.subr.mxu0 0.0
        %605 = vmatpush2.xpose.msra.mxu0 0.0
        %606 = vmatprep.subr.mxu0 0.0
        %607 = vmatpush2.xpose.msra.mxu0 0.0
        %608 = vmatprep.subr.mxu0 0.0
        %609 = vmatpush2.xpose.msra.mxu0 0.0
        %610 = vmatprep.subr.mxu0 0.0
        %611 = vmatpush2.xpose.msra.mxu0 0.0
        %612 = vmatprep.subr.mxu0 0.0
        %613 = vmatpush2.xpose.msra.mxu0 0.0
        %614 = vmatprep.subr.mxu0 0.0
        %615 = vmatpush2.xpose.msra.mxu0 0.0
        %616 = vmatprep.subr.mxu0 0.0
        %617 = vmatpush2.xpose.msra.mxu0 0.0
        %618 = vmatprep.subr.mxu0 0.0
        %619 = vmatpush2.xpose.msra.mxu0 0.0
        %620 = vmatprep.subr.mxu0 0.0
        %621 = vmatpush2.xpose.msra.mxu0 0.0
        %622 = vmatprep.subr.mxu0 0.0
        %623 = vmatpush2.xpose.msra.mxu0 0.0
        %624 = vmatprep.subr.mxu0 0.0
        %625 = vmatpush2.xpose.msra.mxu0 0.0
        %626 = vmatprep.subr.mxu0 0.0
        %627 = vmatpush2.xpose.msra.mxu0 0.0
        %628 = vmatprep.subr.mxu0 0.0
        %629 = vmatpush2.xpose.msra.mxu0 0.0
        %630 = vmatprep.mubr.f32.mxu0 0.0
        %631 = vmatmul.mubr.f32.gmra.mxu0 %v543
        %v632 = vpop.f32.mrf.mxu0
        %v633 = vadd.f32 0.0, %v632
        %v634 = vpop.f32.mrf.mxu0
        %635 = vmatprep.mubr.f32.mxu0 0.0
        %636 = vmatmul.mubr.f32.gmra.mxu0 %v546
        %v637 = vpop.f32.mrf.mxu0
        %v638 = vadd.f32 0.0, %v637
        %v639 = vpop.f32.mrf.mxu0
        %640 = vmatprep.mubr.f32.mxu0 0.0
        %641 = vmatmul.mubr.f32.gmra.mxu0 %v549
        %v642 = vpop.f32.mrf.mxu0
        %v643 = vadd.f32 0.0, %v642
        %v644 = vpop.f32.mrf.mxu0
        %645 = vmatprep.mubr.f32.mxu0 0.0
        %646 = vmatmul.mubr.f32.gmra.mxu0 %v552
        %v647 = vpop.f32.mrf.mxu0
        %v648 = vadd.f32 0.0, %v647
        %v649 = vpop.f32.mrf.mxu0
        %650 = vmatprep.mubr.f32.mxu0 0.0
        %651 = vmatmul.mubr.f32.gmra.mxu0 %v555
        %v652 = vpop.f32.mrf.mxu0
        %v653 = vadd.f32 0.0, %v652
        %v654 = vpop.f32.mrf.mxu0
        %655 = vmatprep.mubr.f32.mxu0 0.0
        %656 = vmatmul.mubr.f32.gmra.mxu0 %v558
        %v657 = vpop.f32.mrf.mxu0
        %v658 = vadd.f32 0.0, %v657
        %v659 = vpop.f32.mrf.mxu0
        %660 = vmatprep.mubr.f32.mxu0 0.0
        %661 = vmatmul.mubr.f32.gmra.mxu0 %v561
        %v662 = vpop.f32.mrf.mxu0
        %v663 = vadd.f32 0.0, %v662
        %v664 = vpop.f32.mrf.mxu0
        %665 = vmatprep.mubr.f32.mxu0 0.0
        %666 = vmatmul.mubr.f32.gmra.mxu0 %v564
        %v667 = vpop.f32.mrf.mxu0
        %v668 = vadd.f32 0.0, %v667
        %v669 = vpop.f32.mrf.mxu0
        %670 = vdwg.mxu0
        %671 = vst.msk [vmem:[%s346] sm:$0xff] %vm372, %v633
        %672 = vst.msk [vmem:[%s346 + $0x8] sm:$0xff] %vm372, %v638
        %673 = vst.msk [vmem:[%s346 + $0x10] sm:$0xff] %vm372, %v643
        %674 = vst.msk [vmem:[%s346 + $0x18] sm:$0xff] %vm372, %v648
        %675 = vst.msk [vmem:[%s346 + $0x20] sm:$0xff] %vm372, %v653
        %676 = vst.msk [vmem:[%s346 + $0x28] sm:$0xff] %vm372, %v658
        %677 = vst.msk [vmem:[%s346 + $0x30] sm:$0xff] %vm372, %v663
        %678 = vst.msk [vmem:[%s346 + $0x38] sm:$0xff] %vm372, %v668
        %v679 = vld [vmem:[#allocation8] sm:$0xff]
        %v680 = vld [vmem:[#allocation8 + $0x8] sm:$0xff]
        %v681 = vld [vmem:[#allocation8 + $0x10] sm:$0xff]
        %v682 = vld [vmem:[#allocation8 + $0x18] sm:$0xff]
        %v683 = vld [vmem:[#allocation8 + $0x20] sm:$0xff]
        %v684 = vld [vmem:[#allocation8 + $0x28] sm:$0xff]
        %v685 = vld [vmem:[#allocation8 + $0x30] sm:$0xff]
        %v686 = vld [vmem:[#allocation8 + $0x38] sm:$0xff]
        %v688 = vsel %vm372, %v679, 0
        %v691 = vsel %vm372, %v680, 0
        %v694 = vsel %vm372, %v681, 0
        %v697 = vsel %vm372, %v682, 0
        %v700 = vsel %vm372, %v683, 0
        %v703 = vsel %vm372, %v684, 0
        %v706 = vsel %vm372, %v685, 0
        %v709 = vsel %vm372, %v686, 0
        %711 = vmatprep.subr.mxu0 0.0
        %712 = vmatpush1.xpose.msra.mxu0 0.0
        %713 = vmatprep.subr.mxu0 0.0
        %714 = vmatpush1.xpose.msra.mxu0 0.0
        %715 = vmatprep.subr.mxu0 0.0
        %716 = vmatpush1.xpose.msra.mxu0 0.0
        %717 = vmatprep.subr.mxu0 0.0
        %718 = vmatpush1.xpose.msra.mxu0 0.0
        %719 = vmatprep.subr.mxu0 0.0
        %720 = vmatpush1.xpose.msra.mxu0 0.0
        %721 = vmatprep.subr.mxu0 0.0
        %722 = vmatpush1.xpose.msra.mxu0 0.0
        %723 = vmatprep.subr.mxu0 0.0
        %724 = vmatpush1.xpose.msra.mxu0 0.0
        %725 = vmatprep.subr.mxu0 0.0
        %726 = vmatpush1.xpose.msra.mxu0 0.0
        %727 = vmatprep.subr.mxu0 0.0
        %728 = vmatpush1.xpose.msra.mxu0 %v395
        %729 = vmatprep.subr.mxu0 0.0
        %730 = vmatpush1.xpose.msra.mxu0 %v392
        %731 = vmatprep.subr.mxu0 0.0
        %732 = vmatpush1.xpose.msra.mxu0 %v389
        %733 = vmatprep.subr.mxu0 0.0
        %734 = vmatpush1.xpose.msra.mxu0 %v386
        %735 = vmatprep.subr.mxu0 0.0
        %736 = vmatpush1.xpose.msra.mxu0 %v383
        %737 = vmatprep.subr.mxu0 0.0
        %738 = vmatpush1.xpose.msra.mxu0 %v380
        %739 = vmatprep.subr.mxu0 0.0
        %740 = vmatpush1.xpose.msra.mxu0 %v377
        %741 = vmatprep.subr.mxu0 0.0
        %742 = vmatpush1.xpose.msra.mxu0 %v374
        %743 = vmatprep.subr.mxu0 0.0
        %744 = vmatpush2.xpose.msra.mxu0 0.0
        %745 = vmatprep.subr.mxu0 0.0
        %746 = vmatpush2.xpose.msra.mxu0 0.0
        %747 = vmatprep.subr.mxu0 0.0
        %748 = vmatpush2.xpose.msra.mxu0 0.0
        %749 = vmatprep.subr.mxu0 0.0
        %750 = vmatpush2.xpose.msra.mxu0 0.0
        %751 = vmatprep.subr.mxu0 0.0
        %752 = vmatpush2.xpose.msra.mxu0 0.0
        %753 = vmatprep.subr.mxu0 0.0
        %754 = vmatpush2.xpose.msra.mxu0 0.0
        %755 = vmatprep.subr.mxu0 0.0
        %756 = vmatpush2.xpose.msra.mxu0 0.0
        %757 = vmatprep.subr.mxu0 0.0
        %758 = vmatpush2.xpose.msra.mxu0 0.0
        %759 = vmatprep.subr.mxu0 0.0
        %760 = vmatpush2.xpose.msra.mxu0 0.0
        %761 = vmatprep.subr.mxu0 0.0
        %762 = vmatpush2.xpose.msra.mxu0 0.0
        %763 = vmatprep.subr.mxu0 0.0
        %764 = vmatpush2.xpose.msra.mxu0 0.0
        %765 = vmatprep.subr.mxu0 0.0
        %766 = vmatpush2.xpose.msra.mxu0 0.0
        %767 = vmatprep.subr.mxu0 0.0
        %768 = vmatpush2.xpose.msra.mxu0 0.0
        %769 = vmatprep.subr.mxu0 0.0
        %770 = vmatpush2.xpose.msra.mxu0 0.0
        %771 = vmatprep.subr.mxu0 0.0
        %772 = vmatpush2.xpose.msra.mxu0 0.0
        %773 = vmatprep.subr.mxu0 0.0
        %774 = vmatpush2.xpose.msra.mxu0 0.0
        %775 = vmatprep.mubr.f32.mxu0 0.0
        %776 = vmatmul.mubr.f32.gmra.mxu0 %v688
        %v777 = vpop.f32.mrf.mxu0
        %v778 = vadd.f32 0.0, %v777
        %v779 = vpop.f32.mrf.mxu0
        %780 = vmatprep.mubr.f32.mxu0 0.0
        %781 = vmatmul.mubr.f32.gmra.mxu0 %v691
        %v782 = vpop.f32.mrf.mxu0
        %v783 = vadd.f32 0.0, %v782
        %v784 = vpop.f32.mrf.mxu0
        %785 = vmatprep.mubr.f32.mxu0 0.0
        %786 = vmatmul.mubr.f32.gmra.mxu0 %v694
        %v787 = vpop.f32.mrf.mxu0
        %v788 = vadd.f32 0.0, %v787
        %v789 = vpop.f32.mrf.mxu0
        %790 = vmatprep.mubr.f32.mxu0 0.0
        %791 = vmatmul.mubr.f32.gmra.mxu0 %v697
        %v792 = vpop.f32.mrf.mxu0
        %v793 = vadd.f32 0.0, %v792
        %v794 = vpop.f32.mrf.mxu0
        %795 = vmatprep.mubr.f32.mxu0 0.0
        %796 = vmatmul.mubr.f32.gmra.mxu0 %v700
        %v797 = vpop.f32.mrf.mxu0
        %v798 = vadd.f32 0.0, %v797
        %v799 = vpop.f32.mrf.mxu0
        %800 = vmatprep.mubr.f32.mxu0 0.0
        %801 = vmatmul.mubr.f32.gmra.mxu0 %v703
        %v802 = vpop.f32.mrf.mxu0
        %v803 = vadd.f32 0.0, %v802
        %v804 = vpop.f32.mrf.mxu0
        %805 = vmatprep.mubr.f32.mxu0 0.0
        %806 = vmatmul.mubr.f32.gmra.mxu0 %v706
        %v807 = vpop.f32.mrf.mxu0
        %v808 = vadd.f32 0.0, %v807
        %v809 = vpop.f32.mrf.mxu0
        %810 = vmatprep.mubr.f32.mxu0 0.0
        %811 = vmatmul.mubr.f32.gmra.mxu0 %v709
        %v812 = vpop.f32.mrf.mxu0
        %v813 = vadd.f32 0.0, %v812
        %v814 = vpop.f32.mrf.mxu0
        %815 = vdwg.mxu0
        %816 = vst.msk [vmem:[%s353] sm:$0xff] %vm372, %v778
        %817 = vst.msk [vmem:[%s353 + $0x8] sm:$0xff] %vm372, %v783
        %818 = vst.msk [vmem:[%s353 + $0x10] sm:$0xff] %vm372, %v788
        %819 = vst.msk [vmem:[%s353 + $0x18] sm:$0xff] %vm372, %v793
        %820 = vst.msk [vmem:[%s353 + $0x20] sm:$0xff] %vm372, %v798
        %821 = vst.msk [vmem:[%s353 + $0x28] sm:$0xff] %vm372, %v803
        %822 = vst.msk [vmem:[%s353 + $0x30] sm:$0xff] %vm372, %v808
        %823 = vst.msk [vmem:[%s353 + $0x38] sm:$0xff] %vm372, %v813
        %s824 = sand.u32 %s142, 1
        %s825 = scalar_lea.sflag [#allocation4], %s824
        %s826 = sand.u32 %s142, 1
        %s827 = smul.addr %s826, 64
        %s828 = scalar_lea.vmem [#allocation10], %s827
        %s829 = sand.u32 %s29, 1
        %s830 = scalar_lea.sflag [#allocation12], %s829
        %s831 = sand.u32 %s170, 1
        %s832 = smul.addr %s831, 64
        %s833 = scalar_lea.vmem [#allocation11], %s832
        %s834 = sand.u32 %s29, 1
        %s835 = scalar_lea.sflag [#allocation12], %s834
        %s836 = sand.u32 %s198, 1
        %s837 = smul.addr %s836, 64
        %s838 = scalar_lea.vmem [#allocation13], %s837
        // Predicated region
        $region53: #{tpu_custom_call.1} parent=35 // pred_check
          %p839 = pneg %p152
        $region54: #{tpu_custom_call.1} parent=35 // pred_check_branch
          %841 = sbr.rel (%p839) target = $region56
        $region55: #{tpu_custom_call.1} parent=35 // pred_region
          %s842 = smul.u32 8, %s34
          %s844 = ssub.s32 1024, 1024
          %845 = vsyncadd %s825, %s844
          %s846 = smul.addr %s33, 8
          %s847 = sadd.s32 %s842, %s846
          %s848 = smul.addr %s847, 128
          %s849 = scalar_lea.hbm %s4, %s848
          %s850 = sshll.u32 %s828, 4
          %s851 = int_to_ptr.vmem [resolvable:$true] %s850
          %856 = dma.vmem_to_hbm [thread:$0]  %s851, 1024, %s849, %s825, 128, 128, 8
        $region56: #{tpu_custom_call.1} parent=35 // pred_fallthru
          _
        // Predicated region
        $region57: #{tpu_custom_call.1} parent=35 // pred_check
          %p857 = pneg %p180
        $region58: #{tpu_custom_call.1} parent=35 // pred_check_branch
          %859 = sbr.rel (%p857) target = $region60
        $region59: #{tpu_custom_call.1} parent=35 // pred_region
          %s861 = ssub.s32 1024, 1024
          %862 = vsyncadd %s830, %s861
          %s863 = smul.addr %s33, 8
          %s864 = sadd.s32 %s34, %s863
          %s865 = smul.addr %s864, 128
          %s866 = scalar_lea.hbm %s5, %s865
          %s867 = sshll.u32 %s833, 4
          %s868 = int_to_ptr.vmem [resolvable:$true] %s867
          %873 = dma.vmem_to_hbm [thread:$0]  %s868, 1024, %s866, %s830, 128, 128, 8
        $region60: #{tpu_custom_call.1} parent=35 // pred_fallthru
          _
        // Predicated region
        $region61: #{tpu_custom_call.1} parent=35 // pred_check
          %p874 = pneg %p208
        $region62: #{tpu_custom_call.1} parent=35 // pred_check_branch
          %876 = sbr.rel (%p874) target = $region64
        $region63: #{tpu_custom_call.1} parent=35 // pred_region
          %s878 = ssub.s32 1024, 1024
          %879 = vsyncadd %s835, %s878
          %s880 = smul.addr %s33, 8
          %s881 = sadd.s32 %s34, %s880
          %s882 = smul.addr %s881, 128
          %s883 = scalar_lea.hbm %s6, %s882
          %s884 = sshll.u32 %s838, 4
          %s885 = int_to_ptr.vmem [resolvable:$true] %s884
          %890 = dma.vmem_to_hbm [thread:$0]  %s885, 1024, %s883, %s835, 128, 128, 8
        $region64: #{tpu_custom_call.1} parent=35 // pred_fallthru
          _
      $region36: #{tpu_custom_call.1} parent=5 // pred_fallthru
        _
      %p891 = scmp.le.s32.totalorder 2, %s24
      // Predicated region
      $region65: #{tpu_custom_call.1} parent=5 // pred_check
        %p892 = pneg %p891
      $region66: #{tpu_custom_call.1} parent=5 // pred_check_branch
        %894 = sbr.rel (%p892) target = $region68
      $region67: #{tpu_custom_call.1} parent=5 // pred_region
        %s895 = ssub.s32 %s24, 2
        // Predicated region
        $region69: #{tpu_custom_call.1} parent=67 // pred_check
          %p896 = pneg %p158
        $region70: #{tpu_custom_call.1} parent=67 // pred_check_branch
          %898 = sbr.rel (%p896) target = $region72
        $region71: #{tpu_custom_call.1} parent=67 // pred_region
          %s899 = sand.u32 %s143, 1
          %s900 = scalar_lea.sflag [#allocation4], %s899
          %s901 = sand.u32 %s143, 1
          %s902 = smul.addr %s901, 64
          %s903 = scalar_lea.vmem [#allocation10], %s902
          %904 = dma.done %s900, 1024
        $region72: #{tpu_custom_call.1} parent=67 // pred_fallthru
          _
        // Predicated region
        $region73: #{tpu_custom_call.1} parent=67 // pred_check
          %p905 = pneg %p186
        $region74: #{tpu_custom_call.1} parent=67 // pred_check_branch
          %907 = sbr.rel (%p905) target = $region76
        $region75: #{tpu_custom_call.1} parent=67 // pred_region
          %s908 = sand.u32 %s30, 1
          %s909 = scalar_lea.sflag [#allocation12], %s908
          %s910 = sand.u32 %s171, 1
          %s911 = smul.addr %s910, 64
          %s912 = scalar_lea.vmem [#allocation11], %s911
          %913 = dma.done %s909, 1024
        $region76: #{tpu_custom_call.1} parent=67 // pred_fallthru
          _
        // Predicated region
        $region77: #{tpu_custom_call.1} parent=67 // pred_check
          %p914 = pneg %p214
        $region78: #{tpu_custom_call.1} parent=67 // pred_check_branch
          %916 = sbr.rel (%p914) target = $region80
        $region79: #{tpu_custom_call.1} parent=67 // pred_region
          %s917 = sand.u32 %s30, 1
          %s918 = scalar_lea.sflag [#allocation12], %s917
          %s919 = sand.u32 %s199, 1
          %s920 = smul.addr %s919, 64
          %s921 = scalar_lea.vmem [#allocation13], %s920
          %922 = dma.done %s918, 1024
        $region80: #{tpu_custom_call.1} parent=67 // pred_fallthru
          _
      $region68: #{tpu_custom_call.1} parent=5 // pred_fallthru
        _
    $region6: #{tpu_custom_call.1} parent=1 // loop_footer
      %s28 = sadd.s32 1, %s24
    $region7: #{tpu_custom_call.1} parent=1 // loop_footer_branch
      %23 = sbr.rel target = $region3
    $region8: #{tpu_custom_call.1} parent=1 // loop_exit
      _
    %923 = vsyncpa [#allocation3], 1
    %s924 = scalar_lea.sflag [#allocation3], 1
    %925 = vsyncpa %s924, 1
    %926 = vsyncpa [#allocation6], 1
    %927 = vsyncpa [#allocation9], 1
    %928 = vsyncpa [#allocation4], 1
    %s929 = scalar_lea.sflag [#allocation4], 1
    %930 = vsyncpa %s929, 1
    %931 = vsyncpa [#allocation12], 1
    %s932 = scalar_lea.sflag [#allocation12], 1
    %933 = vsyncpa %s932, 1

</llo_original>
